<compile_context>
chip_gen: v5e
topology: v5e:2x2
jax: 0.10.0
libtpu: 0.0.40
codegen_flags: <defaults>
</compile_context>

<pallas_src>
import math
import numpy as np
import jax
import jax.numpy as jnp
from jax import lax
from jax.experimental import pallas as pl
from jax.experimental.pallas import tpu as pltpu


# ----------------------------------------------------------------------------
# Parameter construction (mirrors init_kernels in the PyTorch module)
# ----------------------------------------------------------------------------
def _hamming_periodic(win_len):
    # scipy.signal.get_window('hamming', win_len, fftbins=True)
    n = np.arange(win_len)
    return 0.54 - 0.46 * np.cos(2.0 * np.pi * n / win_len)


def init_kernels(win_len, win_inc, fft_len, win_type=None, invers=False, window=None):
    if win_type == "None" or win_type is None:
        window = np.ones(win_len)
    elif win_type in ("SGP", "sgp"):
        window = window
    elif win_type == "hamming":
        window = _hamming_periodic(win_len)
    else:
        raise ValueError(f"unsupported win_type for this synthetic setup: {win_type}")
    N = fft_len
    fourier_basis = np.fft.rfft(np.eye(N))[:win_len]          # [win_len, N//2+1] complex
    real_kernel = np.real(fourier_basis)
    imag_kernel = np.imag(fourier_basis)
    kernel = np.concatenate([real_kernel, imag_kernel], 1).T  # [N+2, win_len]
    if invers:
        kernel = np.linalg.pinv(kernel).T
    kernel = kernel * window
    kernel = kernel[:, None, :]                               # [N+2, 1, win_len]
    return kernel.astype(np.float32), window[None, :, None].astype(np.float32)


def _round_up(x, m):
    return -(-x // m) * m


# ----------------------------------------------------------------------------
# Pallas kernel: frames GEMM + register-resident shifted-sum OLA + fused 1/coff
# ----------------------------------------------------------------------------
def _make_istft_kernel(C, WI, TFO, S, R, L, use_halo, halo, compute_dtype):
    """Per grid step (b, j):
         x_ref    : [C, WI]    spectrum frames [j*WI, j*WI + WI)   (native layout)
         xh_ref   : [C, HB]    (only if use_halo) frames starting at (j+1)*WI
         w_ref    : [C, L]     synthesis weight (VMEM resident across the grid)
         invc_ref : [TFO, S]   1/(coff+1e-8), trim already folded in
         out_ref  : [TFO, S]   trimmed output samples out[b, j*TFO + t, s]
       out[t, s] = sum_{q=0}^{R-1} frames[t + q, (R-1-q)*S + s]   (trailing halo)
    """
    def kernel(*refs):
        if use_halo:
            x_ref, xh_ref, w_ref, invc_ref, out_ref = refs
        else:
            x_ref, w_ref, invc_ref, out_ref = refs

        x = x_ref[...]                                            # [C, WI]
        if use_halo:
            # tiny trailing halo: first `halo` frames of the next block's window
            x = jnp.concatenate([x, xh_ref[...][:, :halo]], axis=1)  # [C, WI+halo]

        # ---- frames GEMM on the MXU (bf16 operands optional, f32 accumulation)
        frames = lax.dot_general(
            x.astype(compute_dtype), w_ref[...].astype(compute_dtype),
            dimension_numbers=(((0,), (0,)), ((), ())),
            preferred_element_type=jnp.float32)                   # [WI+halo, L]

        # ---- overlap-add as an R-term shifted sum, accumulated in registers
        acc = frames[0:TFO, (R - 1) * S:R * S]
        for q in range(1, R):
            acc = acc + frames[q:q + TFO, (R - 1 - q) * S:(R - q) * S]

        # ---- fused window-energy normalization; single store per block
        out_ref[...] = (acc * invc_ref[...]).astype(out_ref.dtype)

    return kernel


# ----------------------------------------------------------------------------
# Module wrapper
# ----------------------------------------------------------------------------
class ConviSTFT:
    def __init__(self, win_len, win_inc, fft_len=None, win_type="hamming",
                 feature_type="real", fix=True, compute_dtype=jnp.float32):
        if fft_len is None:
            self.fft_len = int(2 ** np.ceil(np.log2(win_len)))
        else:
            self.fft_len = fft_len
        kernel, window = init_kernels(win_len, win_inc, self.fft_len, win_type, invers=True)
        self.weight = jnp.asarray(kernel)                       # [C, 1, L] (parity buffer)
        self.window = jnp.asarray(window)                       # [1, L, 1]
        self.enframe = jnp.asarray(np.eye(win_len)[:, None, :].astype(np.float32))
        self.feature_type = feature_type
        self.win_type = win_type
        self.win_len = win_len
        self.stride = win_inc
        self.dim = self.fft_len
        self.compute_dtype = compute_dtype

        L, S = win_len, win_inc
        assert S < L, "ConviSTFT kernel assumes stride < win_len (overlapping frames)"
        assert L % S == 0, "Pallas iSTFT kernel assumes win_len % stride == 0"
        # TODO(synk): support win_len not a multiple of stride (pad weight columns
        #             to ceil(L/S)*S and unfold the trim offset inside a stride column).
        self.R = L // S                                         # frames per output sample
        self.halo = self.R - 1                                  # trailing frame halo
        self.C = self.fft_len + 2
        # GEMM weight [C, L], stored directly in the compute dtype.
        self.w_cl = jnp.asarray(kernel[:, 0, :]).astype(compute_dtype)
        self._w2 = np.asarray(window[0, :, 0], dtype=np.float64) ** 2
        self._plans = {}                                        # (B, T) -> plan

    # ---- per-(B, T) plan: block sizes, normalization rows, pallas_call ----
    def _plan(self, B, T):
        key = (B, T)
        if key in self._plans:
            return self._plans[key]

        L, S, C, R, halo = self.win_len, self.stride, self.C, self.R, self.halo
        assert T > halo, "spectrogram too short for this win_len/stride"
        Tof = T - halo                          # trimmed output frame-columns
        HB = 128                                # lane-aligned halo window width

        if T < HB:
            # Single block: the whole spectrum is one (full-dim) block, every
            # frame needed by the trimmed output is already present -> no halo.
            use_halo, WI, TFO, nb = False, T, Tof, 1
        else:
            use_halo = True
            # Block size: ~8192 output samples per step (amortize per-step
            # overhead, lane-dense DMAs), capped so the frame window stays inside
            # the array and the per-step VMEM footprint stays << 16 MiB (v5e
            # default scoped limit) => no vmem_limit_bytes needed on any gen.
            tf_target = _round_up(max(1, -(-8192 // S)), HB)
            tf_max_in = (T // HB) * HB
            per_frame_bytes = 4 * (2 * C + 4 * S + 2 * L) + 64      # rough, conservative
            tf_vmem = max(HB, ((10 << 20) // per_frame_bytes) // HB * HB)
            TF = max(HB, min(tf_target, tf_max_in, tf_vmem, _round_up(Tof, HB)))
            WI = TFO = TF
            nb = -(-Tof // TF)
            # Invariants the halo formulation relies on:
            assert TF % HB == 0 and halo <= HB

        # Window-energy normalization with the trim folded in:
        #   invc[t, s] = 1 / (coff[(t + halo)*S + s] + 1e-8)
        out_len = (T - 1) * S + L
        coff = np.zeros(out_len, dtype=np.float64)
        for t in range(T):
            coff[t * S:t * S + L] += self._w2
        ncols = nb * TFO * S
        inv = np.zeros(ncols, dtype=np.float32)
        m = np.arange(Tof * S)
        inv[:Tof * S] = (1.0 / (coff[m + halo * S] + 1e-8)).astype(np.float32)
        invc = jnp.asarray(inv.reshape(1, nb * TFO, S))

        kern = _make_istft_kernel(C, WI, TFO, S, R, L, use_halo, halo, self.compute_dtype)

        in_specs = [pl.BlockSpec((None, C, WI), lambda b, j: (b, 0, j))]
        if use_halo:
            n_hb = -(-T // HB)                  # number of HB-wide frame windows
            step = WI // HB
            # Trailing halo window starting at frame (j+1)*WI.  The clamp only
            # triggers when those frames are entirely past T; their (then
            # irrelevant) contributions land in out-of-bounds output rows that
            # Pallas masks on writeback.
            in_specs.append(pl.BlockSpec(
                (None, C, HB),
                lambda b, j, _s=step, _m=n_hb - 1: (b, 0, jnp.minimum((j + 1) * _s, _m))))
        in_specs += [
            pl.BlockSpec((C, L), lambda b, j: (0, 0)),            # weight (resident)
            pl.BlockSpec((None, TFO, S), lambda b, j: (0, j, 0)), # 1/(coff+eps)
        ]

        call = pl.pallas_call(
            kern,
            out_shape=jax.ShapeDtypeStruct((B, Tof, S), jnp.float32),
            grid=(B, nb),
            in_specs=in_specs,
            out_specs=pl.BlockSpec((None, TFO, S), lambda b, j: (b, j, 0)),
            compiler_params=pltpu.CompilerParams(
                dimension_semantics=("parallel", "parallel")),    # independent blocks
        )

        plan = (call, invc, Tof, use_halo)
        self._plans[key] = plan
        return plan

    def __call__(self, inputs, phase=None):
        """
        inputs : [B, N+2, T] (stacked real/imag spec) or [B, N//2+1, T] (mags)
        phase  : [B, N//2+1, T] or None
        returns: [B, 1, (T-1)*stride + win_len - 2*(win_len - stride)]
        """
        if phase is not None:
            # TODO(synk): fuse mag/phase -> (real, imag) cos/sin into the kernel
            #             instead of this plain-JAX elementwise glue.
            real = inputs * jnp.cos(phase)
            imag = inputs * jnp.sin(phase)
            inputs = jnp.concatenate([real, imag], axis=1)

        inputs = jnp.asarray(inputs)
        B, C, T = inputs.shape
        assert C == self.C, (C, self.C)

        call, invc, Tof, use_halo = self._plan(B, T)
        if use_halo:
            out3 = call(inputs, inputs, self.w_cl, invc)          # [B, Tof, S]
        else:
            out3 = call(inputs, self.w_cl, invc)                  # [B, Tof, S]

        # contiguous merge of the last two dims: free, no extra HBM pass
        return out3.reshape(B, 1, Tof * self.stride)


# ----------------------------------------------------------------------------
# Pure NumPy reference of the PyTorch forward (for correctness check)
# ----------------------------------------------------------------------------
def _numpy_reference(inputs, weight, window, win_len, stride):
    B, C, T = inputs.shape
    L = win_len
    out_len = (T - 1) * stride + L
    out = np.zeros((B, out_len), dtype=np.float64)
    w = np.asarray(weight[:, 0, :], dtype=np.float64)
    for b in range(B):
        for t in range(T):
            frame = inputs[b, :, t].astype(np.float64) @ w        # [L]
            out[b, t * stride:t * stride + L] += frame
    coff = np.zeros(out_len, dtype=np.float64)
    w2 = np.asarray(window[0, :, 0], dtype=np.float64) ** 2
    for t in range(T):
        coff[t * stride:t * stride + L] += w2
    out = out / (coff[None, :] + 1e-8)
    trim = win_len - stride
    return out[:, None, trim:out_len - trim]


if __name__ == "__main__":
    win_len, win_inc, fft_len = 16, 8, 16
    C = fft_len + 2
    key = jax.random.PRNGKey(0)

    # --- f32 path: tight tolerance vs the f64 reference --------------------
    model = ConviSTFT(win_len, win_inc, fft_len, win_type="hamming", feature_type="real")
    # (2, 8): single-block (full-dim) path; (2, 200): multi-block path that
    # exercises the trailing frame halo and partial (masked) edge blocks.
    for (B, T) in [(2, 8), (2, 200)]:
        key, sub = jax.random.split(key)
        x = jax.random.normal(sub, (B, C, T), dtype=jnp.float32)   # [B, N+2, T]
        out = jax.block_until_ready(model(x))
        ref = _numpy_reference(np.asarray(x), np.asarray(model.weight),
                               np.asarray(model.window), win_len, win_inc)
        assert out.shape == ref.shape, (out.shape, ref.shape)
        assert np.allclose(np.asarray(out), ref, rtol=1e-4, atol=1e-4), \
            f"mismatch vs reference at T={T}"

    # --- bf16 MXU path (perf-review item): bf16 operands, f32 accumulation --
    model_bf16 = ConviSTFT(win_len, win_inc, fft_len, win_type="hamming",
                           compute_dtype=jnp.bfloat16)
    key, sub = jax.random.split(key)
    B, T = 2, 200
    x = jax.random.normal(sub, (B, C, T), dtype=jnp.float32)
    out = jax.block_until_ready(model_bf16(x))
    ref = _numpy_reference(np.asarray(x), np.asarray(model_bf16.weight),
                           np.asarray(model_bf16.window), win_len, win_inc)
    assert out.shape == ref.shape, (out.shape, ref.shape)
    assert np.allclose(np.asarray(out), ref, rtol=5e-2, atol=5e-2), "bf16 mismatch"

    print("KERNEL_OK")
</pallas_src>

<mosaic_0001>
module attributes {stable_mosaic.version = 11 : i64} {
  func.func @kernel(%arg0: i32, %arg1: i32, %arg2: memref<1x18x8xf32, #tpu.memory_space<vmem>>, %arg3: memref<18x16xf32, #tpu.memory_space<vmem>>, %arg4: memref<1x7x8xf32, #tpu.memory_space<vmem>>, %arg5: memref<1x7x8xf32, #tpu.memory_space<vmem>>) attributes {dimension_semantics = [#tpu.dimension_semantics<parallel>, #tpu.dimension_semantics<parallel>], iteration_bounds = array<i64: 2, 1>, scalar_prefetch = 0 : i64, scratch_operands = 0 : i64, tpu.core_type = #tpu.core_type<tc>, window_params = [{transform_indices = @transform_0, window_bounds = array<i64: 1, 18, 8>}, {pipeline_mode = #tpu.pipeline_mode<synchronous>, transform_indices = @transform_1, window_bounds = array<i64: 18, 16>}, {transform_indices = @transform_2, window_bounds = array<i64: 1, 7, 8>}, {transform_indices = @transform_3, window_bounds = array<i64: 1, 7, 8>}]} {
    %c0 = arith.constant 0 : index
    %c0_0 = arith.constant 0 : index
    %c0_1 = arith.constant 0 : index
    %0 = vector.load %arg2[%c0, %c0_0, %c0_1] : memref<1x18x8xf32, #tpu.memory_space<vmem>>, vector<1x18x8xf32>
    %1 = vector.shape_cast %0 : vector<1x18x8xf32> to vector<18x8xf32>
    %c0_2 = arith.constant 0 : index
    %c0_3 = arith.constant 0 : index
    %2 = vector.load %arg3[%c0_2, %c0_3] : memref<18x16xf32, #tpu.memory_space<vmem>>, vector<18x16xf32>
    %cst = arith.constant dense<0.000000e+00> : vector<8x16xf32>
    %3 = tpu.matmul %1, %2, %cst {dimension_numbers = #tpu.dot_dimension_numbers<[0], [0], [1], [1], [0, 1, 1, 1], [], []>} : vector<18x8xf32>, vector<18x16xf32>, vector<8x16xf32> -> vector<8x16xf32>
    %4 = vector.extract_strided_slice %3 {offsets = [0, 8], sizes = [7, 8], strides = [1, 1]} : vector<8x16xf32> to vector<7x8xf32>
    %5 = vector.extract_strided_slice %3 {offsets = [1, 0], sizes = [7, 8], strides = [1, 1]} : vector<8x16xf32> to vector<7x8xf32>
    %6 = arith.addf %4, %5 : vector<7x8xf32>
    %c0_4 = arith.constant 0 : index
    %c0_5 = arith.constant 0 : index
    %c0_6 = arith.constant 0 : index
    %7 = vector.load %arg4[%c0_4, %c0_5, %c0_6] : memref<1x7x8xf32, #tpu.memory_space<vmem>>, vector<1x7x8xf32>
    %8 = vector.shape_cast %7 : vector<1x7x8xf32> to vector<7x8xf32>
    %9 = arith.mulf %6, %8 : vector<7x8xf32>
    %c0_7 = arith.constant 0 : index
    %c0_8 = arith.constant 0 : index
    %c0_9 = arith.constant 0 : index
    %10 = vector.load %arg5[%c0_7, %c0_8, %c0_9] : memref<1x7x8xf32, #tpu.memory_space<vmem>>, vector<1x7x8xf32>
    %11 = vector.shape_cast %10 : vector<1x7x8xf32> to vector<7x8xf32>
    %12 = vector.shape_cast %9 : vector<7x8xf32> to vector<1x7x8xf32>
    tpu.vector_store %arg5[%c0_7, %c0_8, %c0_9], %12 {strides = array<i32>} : memref<1x7x8xf32, #tpu.memory_space<vmem>>, vector<1x7x8xf32>,
    return
  }
  func.func @transform_0(%arg0: i32, %arg1: i32) -> (i32, i32, i32) {
    %c0_i32 = arith.constant 0 : i32
    %c0_i32_0 = arith.constant 0 : i32
    return %arg0, %c0_i32, %arg1 : i32, i32, i32
  }
  func.func @transform_1(%arg0: i32, %arg1: i32) -> (i32, i32) {
    %c0_i32 = arith.constant 0 : i32
    %c0_i32_0 = arith.constant 0 : i32
    %c0_i32_1 = arith.constant 0 : i32
    return %c0_i32, %c0_i32_0 : i32, i32
  }
  func.func @transform_2(%arg0: i32, %arg1: i32) -> (i32, i32, i32) {
    %c0_i32 = arith.constant 0 : i32
    %c0_i32_0 = arith.constant 0 : i32
    %c0_i32_1 = arith.constant 0 : i32
    return %c0_i32, %arg1, %c0_i32_0 : i32, i32, i32
  }
  func.func @transform_3(%arg0: i32, %arg1: i32) -> (i32, i32, i32) {
    %c0_i32 = arith.constant 0 : i32
    %c0_i32_0 = arith.constant 0 : i32
    return %arg0, %arg1, %c0_i32 : i32, i32, i32
  }
}

</mosaic_0001>

<llo_original>
// kernel: tpu_custom_call.1
$region0: #{tpu_custom_call.1}
  #allocation0 [shape = 'u32[]', space=smem, size = 0x4, offset = 0x4, fixed_abs, tag = 'smem constant byte address 0x4 - core index']
  #allocation1 [shape = 'u32[72,128]{1,0:T(1,128)}', space=vmem, size = 0x9000, scoped, tag = 'internal scratch']
  %s0 = inlined_call_operand.vmem [shape: f32[2,18,8], index: 0, kind: input, shape index: {}]
  %s1 = inlined_call_operand.vmem [shape: f32[18,16], index: 1, kind: input, shape index: {}]
  %s2 = inlined_call_operand.vmem [shape: f32[1,7,8], index: 2, kind: input, shape index: {}]
  %s3 = inlined_call_operand.vmem [shape: f32[2,7,8], index: 3, kind: output, shape index: {}]
  %s4 = sld [smem:[#allocation0]]
  $region45: #{tpu_custom_call.1} parent=0
    _
  %s6 = ssub.s32 1, %s4
  %s7 = scalar_select 0, %s6, %s4
  loop: start=0, step=1, limit=4
  $region2: #{tpu_custom_call.1} parent=0 // loop_pre_header
    _
  $region3: #{tpu_custom_call.1} parent=0 // loop_header
    %s9 = sphi 0, %s13
    %p10 = scmp.ge.s32.totalorder %s9, 4
    %s16 = sphi 0, %s28
    %s17 = sphi 0, %s24
    %s18 = sphi 0, %s16
    %s19 = sphi 0, %s17
    %s20 = sphi 0, %s18
    %s21 = sphi 0, %s19
    %s33 = sphi 0, %s35
    %s36 = sphi 0, %s33
    %s37 = sphi 0, %s36
    %s53 = sphi 0, %s37
    %s57 = sphi 0, %s57
    %s59 = sphi 0, %s57
    %s60 = sphi 0, %s59
    %s74 = sphi 0, %s60
    %s80 = sphi 0, %s82
    %s83 = sphi 0, %s80
    %s84 = sphi 0, %s83
    %s100 = sphi 0, %s84
    %s108 = sphi 0, %s110
    %s111 = sphi 0, %s108
    %s112 = sphi 0, %s111
    %s128 = sphi 0, %s112
  $region4: #{tpu_custom_call.1} parent=0 // loop_header_branch
    %12 = sbr.rel (%p10) target = $region8
  $region5: #{tpu_custom_call.1} parent=0 // loop_body
    %s14 = ssub.s32 %s9, 1
    %s15 = ssub.s32 %s9, 2
    %s22 = sadd.s32 1, %s17
    %p23 = scmp.ge.s32.totalorder %s22, 1
    %s24 = scalar_select %p23, 0, %s22
    %s25 = sadd.s32 1, %s16
    %s26 = scalar_select %p23, %s25, %s16
    %p27 = scmp.ge.s32.totalorder %s26, 2
    %s28 = scalar_select %p27, 0, %s26
    %s29 = ssub.s32 %s16, %s28
    %s30 = ssub.s32 %s17, %s24
    %s31 = sor.u32 %s29, %s30
    %p32 = scmp.eq.s32.totalorder %s31, 0
    %s34 = sadd.s32 %s33, 1
    %s35 = scalar_select %p32, %s33, %s34
    %p38 = pneg %p32
    %p39 = scmp.eq.s32.totalorder %s9, 1
    %p40 = por %p38, %p39
    %p41 = scmp.ne.s32.totalorder %s33, %s36
    %p42 = scmp.eq.s32.totalorder %s9, 0
    %p43 = por %p41, %p42
    %p44 = scmp.ne.s32.totalorder %s33, %s36
    %p45 = scmp.eq.s32.totalorder %s14, 1
    %p46 = por %p44, %p45
    %p47 = scmp.ne.s32.totalorder %s36, %s37
    %p48 = scmp.eq.s32.totalorder %s14, 0
    %p49 = por %p47, %p48
    %p50 = scmp.ne.s32.totalorder %s36, %s37
    %p51 = scmp.eq.s32.totalorder %s15, 1
    %p52 = por %p50, %p51
    %p54 = scmp.ne.s32.totalorder %s37, %s53
    %p55 = scmp.eq.s32.totalorder %s15, 0
    %p56 = por %p54, %p55
    %s58 = sadd.s32 %s57, 1
    %p61 = scmp.eq.s32.totalorder %s9, 1
    %p62 = scmp.ne.s32.totalorder %s57, %s59
    %p63 = scmp.eq.s32.totalorder %s9, 0
    %p64 = por %p62, %p63
    %p65 = scmp.ne.s32.totalorder %s57, %s59
    %p66 = scmp.eq.s32.totalorder %s14, 1
    %p67 = por %p65, %p66
    %p68 = scmp.ne.s32.totalorder %s59, %s60
    %p69 = scmp.eq.s32.totalorder %s14, 0
    %p70 = por %p68, %p69
    %p71 = scmp.ne.s32.totalorder %s59, %s60
    %p72 = scmp.eq.s32.totalorder %s15, 1
    %p73 = por %p71, %p72
    %p75 = scmp.ne.s32.totalorder %s60, %s74
    %p76 = scmp.eq.s32.totalorder %s15, 0
    %p77 = por %p75, %p76
    %s78 = ssub.s32 %s17, %s24
    %p79 = scmp.eq.s32.totalorder %s78, 0
    %s81 = sadd.s32 %s80, 1
    %s82 = scalar_select %p79, %s80, %s81
    %p85 = pneg %p79
    %p86 = scmp.eq.s32.totalorder %s9, 1
    %p87 = por %p85, %p86
    %p88 = scmp.ne.s32.totalorder %s80, %s83
    %p89 = scmp.eq.s32.totalorder %s9, 0
    %p90 = por %p88, %p89
    %p91 = scmp.ne.s32.totalorder %s80, %s83
    %p92 = scmp.eq.s32.totalorder %s14, 1
    %p93 = por %p91, %p92
    %p94 = scmp.ne.s32.totalorder %s83, %s84
    %p95 = scmp.eq.s32.totalorder %s14, 0
    %p96 = por %p94, %p95
    %p97 = scmp.ne.s32.totalorder %s83, %s84
    %p98 = scmp.eq.s32.totalorder %s15, 1
    %p99 = por %p97, %p98
    %p101 = scmp.ne.s32.totalorder %s84, %s100
    %p102 = scmp.eq.s32.totalorder %s15, 0
    %p103 = por %p101, %p102
    %s104 = ssub.s32 %s16, %s28
    %s105 = ssub.s32 %s17, %s24
    %s106 = sor.u32 %s104, %s105
    %p107 = scmp.eq.s32.totalorder %s106, 0
    %s109 = sadd.s32 %s108, 1
    %s110 = scalar_select %p107, %s108, %s109
    %p113 = pneg %p107
    %p114 = scmp.eq.s32.totalorder %s9, 1
    %p115 = por %p113, %p114
    %p116 = scmp.ne.s32.totalorder %s108, %s111
    %p117 = scmp.eq.s32.totalorder %s9, 0
    %p118 = por %p116, %p117
    %p119 = scmp.ne.s32.totalorder %s108, %s111
    %p120 = scmp.eq.s32.totalorder %s14, 1
    %p121 = por %p119, %p120
    %p122 = scmp.ne.s32.totalorder %s111, %s112
    %p123 = scmp.eq.s32.totalorder %s14, 0
    %p124 = por %p122, %p123
    %p125 = scmp.ne.s32.totalorder %s111, %s112
    %p126 = scmp.eq.s32.totalorder %s15, 1
    %p127 = por %p125, %p126
    %p129 = scmp.ne.s32.totalorder %s112, %s128
    %p130 = scmp.eq.s32.totalorder %s15, 0
    %p131 = por %p129, %p130
    %p132 = scmp.le.s32.totalorder 1, %s9
    %p133 = scmp.lt.s32.totalorder %s9, 3
    %p134 = pnand %p132, %p133
    %p135 = pneg %p134
    // Predicated region
    $region9: #{tpu_custom_call.1} parent=5 // pred_check
      _
    $region10: #{tpu_custom_call.1} parent=5 // pred_check_branch
      %137 = sbr.rel (%p134) target = $region12
    $region11: #{tpu_custom_call.1} parent=5 // pred_region
      %s138 = ssub.s32 %s9, 1
      // Predicated region
      $region13: #{tpu_custom_call.1} parent=11 // pred_check
        %p139 = pneg %p70
      $region14: #{tpu_custom_call.1} parent=11 // pred_check_branch
        %141 = sbr.rel (%p139) target = $region16
      $region15: #{tpu_custom_call.1} parent=11 // pred_region
        _
      $region16: #{tpu_custom_call.1} parent=11 // pred_fallthru
        _
      // Predicated region
      $region17: #{tpu_custom_call.1} parent=11 // pred_check
        %p142 = pneg %p96
      $region18: #{tpu_custom_call.1} parent=11 // pred_check_branch
        %144 = sbr.rel (%p142) target = $region20
      $region19: #{tpu_custom_call.1} parent=11 // pred_region
        %p145 = scmp.lt.s32.totalorder %s19, 0
        %s146 = scalar_select %p145, %s19, 0
        %s147 = smul.addr %s146, 8
        %s148 = scalar_lea.vmem %s2, %s147
      $region20: #{tpu_custom_call.1} parent=11 // pred_fallthru
        _
    $region12: #{tpu_custom_call.1} parent=5 // pred_fallthru
      _
    %p149 = scmp.lt.s32.totalorder %s9, 2
    // Predicated region
    $region21: #{tpu_custom_call.1} parent=5 // pred_check
      %p150 = pneg %p149
    $region22: #{tpu_custom_call.1} parent=5 // pred_check_branch
      %152 = sbr.rel (%p150) target = $region24
    $region23: #{tpu_custom_call.1} parent=5 // pred_region
      // Predicated region
      $region25: #{tpu_custom_call.1} parent=23 // pred_check
        %p153 = pneg %p43
      $region26: #{tpu_custom_call.1} parent=23 // pred_check_branch
        %155 = sbr.rel (%p153) target = $region28
      $region27: #{tpu_custom_call.1} parent=23 // pred_region
        %p156 = scmp.lt.s32.totalorder %s16, 1
        %s157 = scalar_select %p156, %s16, 1
        %p158 = scmp.lt.s32.totalorder %s17, 0
        %s159 = scalar_select %p158, %s17, 0
        %s160 = smul.addr %s157, 3
        %s161 = sadd.s32 %s159, %s160
        %s162 = smul.addr %s161, 8
        %s163 = scalar_lea.vmem %s0, %s162
      $region28: #{tpu_custom_call.1} parent=23 // pred_fallthru
        _
    $region24: #{tpu_custom_call.1} parent=5 // pred_fallthru
      _
    %p164 = scmp.le.s32.totalorder 1, %s9
    %p165 = scmp.lt.s32.totalorder %s9, 3
    %p166 = pnand %p164, %p165
    %p167 = pneg %p166
    // Predicated region
    $region29: #{tpu_custom_call.1} parent=5 // pred_check
      _
    $region30: #{tpu_custom_call.1} parent=5 // pred_check_branch
      %169 = sbr.rel (%p166) target = $region32
    $region31: #{tpu_custom_call.1} parent=5 // pred_region
      %s170 = ssub.s32 %s9, 1
      %p171 = scmp.lt.s32.totalorder %s18, 1
      %s172 = scalar_select %p171, %s18, 1
      %p173 = scmp.lt.s32.totalorder %s19, 0
      %s174 = scalar_select %p173, %s19, 0
      %s175 = smul.addr %s172, 3
      %s176 = sadd.s32 %s174, %s175
      %s177 = smul.addr %s176, 8
      %s178 = scalar_lea.vmem %s0, %s177
      %p179 = pneg %p49
      %p180 = pneg %p46
      %p181 = pneg %p70
      %p182 = pneg %p67
      %p183 = scmp.lt.s32.totalorder %s19, 0
      %s184 = scalar_select %p183, %s19, 0
      %s185 = smul.addr %s184, 8
      %s186 = scalar_lea.vmem %s2, %s185
      %p187 = pneg %p96
      %p188 = pneg %p93
      %p189 = pneg %p124
      %p190 = pneg %p121
      %p191 = scmp.lt.s32.totalorder %s18, 1
      %s192 = scalar_select %p191, %s18, 1
      %p193 = scmp.lt.s32.totalorder %s19, 0
      %s194 = scalar_select %p193, %s19, 0
      %s195 = sadd.s32 %s194, %s192
      %s196 = smul.addr %s195, 8
      %s197 = scalar_lea.vmem %s3, %s196
      %p198 = scmp.lt.s32.totalorder %s18, 1
      %s199 = scalar_select %p198, %s18, 1
      %p200 = scmp.lt.s32.totalorder %s19, 0
      %s201 = scalar_select %p200, %s19, 0
      %s202 = smul.addr %s199, 3
      %s203 = sadd.s32 %s201, %s202
      %s204 = smul.addr %s203, 8
      %s205 = scalar_lea.vmem %s0, %s204
      %p206 = scmp.lt.s32.totalorder %s19, 0
      %s207 = scalar_select %p206, %s19, 0
      %s208 = smul.addr %s207, 8
      %s209 = scalar_lea.vmem %s2, %s208
      %p210 = scmp.lt.s32.totalorder %s18, 1
      %s211 = scalar_select %p210, %s18, 1
      %p212 = scmp.lt.s32.totalorder %s19, 0
      %s213 = scalar_select %p212, %s19, 0
      %s214 = sadd.s32 %s213, %s211
      %s215 = smul.addr %s214, 8
      %s216 = scalar_lea.vmem %s3, %s215
      %v217 = vld [vmem:[%s205] sm:$0xff]
      %v218 = vld [vmem:[%s205 + $0x8] sm:$0xff]
      %v219 = vld [vmem:[%s205 + $0x10] sm:$0x3]
      %v220 = vld [vmem:[%s1] sm:$0xff]
      %v221 = vld [vmem:[%s1 + $0x8] sm:$0xff]
      %v222 = vld [vmem:[%s1 + $0x10] sm:$0x3]
      %223 = vxpose.xlu0.b32.start [1/16] %v217, 128
      %224 = vxpose.xlu0.b32.cont [2/16] %v218, 128
      %225 = vxpose.xlu0.b32.cont [3/16] %v219, 128
      %226 = vxpose.xlu0.b32.cont [4/16] 0.0, 128
      %227 = vxpose.xlu0.b32.cont [5/16] 0.0, 128
      %228 = vxpose.xlu0.b32.cont [6/16] 0.0, 128
      %229 = vxpose.xlu0.b32.cont [7/16] 0.0, 128
      %230 = vxpose.xlu0.b32.cont [8/16] 0.0, 128
      %231 = vxpose.xlu0.b32.cont [9/16] 0.0, 128
      %232 = vxpose.xlu0.b32.cont [10/16] 0.0, 128
      %233 = vxpose.xlu0.b32.cont [11/16] 0.0, 128
      %234 = vxpose.xlu0.b32.cont [12/16] 0.0, 128
      %235 = vxpose.xlu0.b32.cont [13/16] 0.0, 128
      %236 = vxpose.xlu0.b32.cont [14/16] 0.0, 128
      %237 = vxpose.xlu0.b32.cont [15/16] 0.0, 128
      %238 = vxpose.xlu0.b32.end [16/16] 0.0, 128
      %v239 = vpop.trf.xlu0
      %v240 = vpop.trf.xlu0
      %v241 = vpop.trf.xlu0
      %v242 = vpop.trf.xlu0
      %v243 = vpop.trf.xlu0
      %v244 = vpop.trf.xlu0
      %v245 = vpop.trf.xlu0
      %v246 = vpop.trf.xlu0
      %v247 = vpop.trf.xlu0
      %v248 = vpop.trf.xlu0
      %v249 = vpop.trf.xlu0
      %v250 = vpop.trf.xlu0
      %v251 = vpop.trf.xlu0
      %v252 = vpop.trf.xlu0
      %v253 = vpop.trf.xlu0
      %v254 = vpop.trf.xlu0
      %vm255 = vcmask 146432
      %v257 = vsel %vm255, %v239, 0
      %vm259 = vcmask 1041408
      %v261 = vsel %vm259, %v222, 0
      %263 = vmatpush.msra.mxu0 0.0
      %264 = vmatpush.msra.mxu0 0.0
      %265 = vmatpush.msra.mxu0 0.0
      %266 = vmatpush.msra.mxu0 0.0
      %267 = vmatpush.msra.mxu0 0.0
      %268 = vmatpush.msra.mxu0 0.0
      %269 = vmatpush.msra.mxu0 0.0
      %270 = vmatpush.msra.mxu0 0.0
      %271 = vmatpush.msra.mxu0 0.0
      %272 = vmatpush.msra.mxu0 0.0
      %273 = vmatpush.msra.mxu0 0.0
      %274 = vmatpush.msra.mxu0 0.0
      %275 = vmatpush.msra.mxu0 0.0
      %276 = vmatpush.msra.mxu0 %v261
      %277 = vmatpush.msra.mxu0 %v221
      %278 = vmatpush.msra.mxu0 %v220
      %279 = vmatmul.f32.gmra.mxu0 %v257
      %v280 = vpop.f32.mrf.mxu0
      %v281 = vadd.f32 0.0, %v280
      %282 = vdwg.mxu0
      %v284 = vrot.slane %v281, 1
      %285 = vrot.lane.b32.xlu0 %v284, 8
      %v286 = vpop.permute.xlu0 %285
      %v288 = vadd.f32 %v281, %v286
      %v289 = vld [vmem:[%s209] sm:$0x7f]
      %291 = vrot.lane.b32.xlu0 %v289, 8
      %v292 = vpop.permute.xlu0 %291
      %v294 = vmul.f32 %v288, %v292
      %296 = vrot.lane.b32.xlu0 %v294, 120
      %v297 = vpop.permute.xlu0 %296
      %vm299 = vcmask 63488
      %300 = vst.msk [vmem:[%s216] sm:$0x7f] %vm299, %v297
      %p301 = scmp.lt.s32.totalorder %s18, 1
      %s302 = scalar_select %p301, %s18, 1
      %p303 = scmp.lt.s32.totalorder %s19, 0
      %s304 = scalar_select %p303, %s19, 0
      %s305 = sadd.s32 %s304, %s302
      %s306 = smul.addr %s305, 8
      %s307 = scalar_lea.vmem %s3, %s306
      // Predicated region
      $region33: #{tpu_custom_call.1} parent=31 // pred_check
        %p308 = pneg %p121
      $region34: #{tpu_custom_call.1} parent=31 // pred_check_branch
        %310 = sbr.rel (%p308) target = $region36
      $region35: #{tpu_custom_call.1} parent=31 // pred_region
        _
      $region36: #{tpu_custom_call.1} parent=31 // pred_fallthru
        _
    $region32: #{tpu_custom_call.1} parent=5 // pred_fallthru
      _
    %p311 = scmp.le.s32.totalorder 2, %s9
    // Predicated region
    $region37: #{tpu_custom_call.1} parent=5 // pred_check
      %p312 = pneg %p311
    $region38: #{tpu_custom_call.1} parent=5 // pred_check_branch
      %314 = sbr.rel (%p312) target = $region40
    $region39: #{tpu_custom_call.1} parent=5 // pred_region
      %s315 = ssub.s32 %s9, 2
      // Predicated region
      $region41: #{tpu_custom_call.1} parent=39 // pred_check
        %p316 = pneg %p127
      $region42: #{tpu_custom_call.1} parent=39 // pred_check_branch
        %318 = sbr.rel (%p316) target = $region44
      $region43: #{tpu_custom_call.1} parent=39 // pred_region
        %p319 = scmp.lt.s32.totalorder %s20, 1
        %s320 = scalar_select %p319, %s20, 1
        %p321 = scmp.lt.s32.totalorder %s21, 0
        %s322 = scalar_select %p321, %s21, 0
        %s323 = sadd.s32 %s322, %s320
        %s324 = smul.addr %s323, 8
        %s325 = scalar_lea.vmem %s3, %s324
      $region44: #{tpu_custom_call.1} parent=39 // pred_fallthru
        _
    $region40: #{tpu_custom_call.1} parent=5 // pred_fallthru
      _
  $region6: #{tpu_custom_call.1} parent=0 // loop_footer
    %s13 = sadd.s32 1, %s9
  $region7: #{tpu_custom_call.1} parent=0 // loop_footer_branch
    %8 = sbr.rel target = $region3
  $region8: #{tpu_custom_call.1} parent=0 // loop_exit
    _

</llo_original>
